<compile_context>
chip_gen: v6e
topology: v6e:2x2x1
jax: 0.10.0
libtpu: 0.0.40
codegen_flags: <defaults>
</compile_context>

<pallas_src>
import functools

import jax
import jax.numpy as jnp
from jax.experimental import pallas as pl
from jax.experimental.pallas import tpu as pltpu


# Packed-parameter slab column layout (single (rows,128) f32 VMEM block).
_DW_COL = 0       # cols 0..8   : depthwise 3x3 tap weights, per (n*Cin+ci) row
_PW_COL = 16      # cols 16..   : pointwise weights, slab[co, 16+ci] = pw_w[ci, co]
_GAMMA_COL = 24   # col 24      : BN gamma per Cout row
_BETA_COL = 25    # col 25      : BN beta per Cout row


def dsconv_kernel(x_hbm, p_ref, o_ref, xpad_ref, dma_sem, *, W, pad):
    # x_hbm   : (N*Cin, H*W)          flat NCHW input, left in HBM (pl.ANY)
    # p_ref   : (rows, 128)           packed params (dw taps / pw / gamma / beta)
    # o_ref   : (N, Cout, H*W)        lane-dense output (H*W multiple of 128)
    # xpad_ref: (N*Cin, 2*pad + H*W)  zero-padded VMEM staging buffer
    NC, HW = x_hbm.shape
    N, Cout, _ = o_ref.shape
    Cin = NC // N

    # ---- DMA HBM -> padded VMEM scratch directly (no separate input block) --
    cp = pltpu.make_async_copy(x_hbm, xpad_ref.at[:, pl.ds(pad, HW)], dma_sem)
    cp.start()
    # Zero only the pad bands (one aligned (NC,128) store each) while the DMA
    # is in flight; the middle HW lanes are written by the DMA itself.
    xpad_ref[:, :pad] = jnp.zeros((NC, pad), jnp.float32)
    xpad_ref[:, pad + HW:] = jnp.zeros((NC, pad), jnp.float32)

    p = p_ref[...]                                   # single packed param tile

    # Row-wrap masks for the flattened H*W axis, built once at full tile shape
    # (top/bottom rows are handled by the zero pad bands).
    lane = jax.lax.broadcasted_iota(jnp.int32, (NC, HW), 1)
    w_idx = lane % W
    not_left = w_idx >= 1                            # for kw == 0 taps
    not_right = w_idx <= W - 2                       # for kw == 2 taps

    cp.wait()
    xp = xpad_ref[...]                               # (NC, 2*pad + HW)

    # ---- depthwise 3x3: 9 lane-shifted MACs on full (8,128) vregs (VPU) ----
    # Edge masking grouped per kw-column: 2 selects total instead of 6.
    col_acc = []
    for kw in range(3):
        a = jnp.zeros((NC, HW), jnp.float32)
        for kh in range(3):
            s = (kh - 1) * W + (kw - 1)              # flat tap offset
            tap = xp[:, pad + s: pad + s + HW]       # static lane-shifted slice
            t = kh * 3 + kw
            a = a + tap * p[0:NC, _DW_COL + t:_DW_COL + t + 1]
        col_acc.append(a)
    acc = (col_acc[1]
           + jnp.where(not_left, col_acc[0], 0.0)
           + jnp.where(not_right, col_acc[2], 0.0))
    # Depthwise bias omitted: per-channel constant cancels in training-mode BN.

    # ---- pointwise 1x1: Cin broadcast-MACs on the VPU (too small for MXU) ---
    for n in range(N):
        yn = jnp.zeros((Cout, HW), jnp.float32)
        for ci in range(Cin):
            yn = yn + (acc[n * Cin + ci: n * Cin + ci + 1, :]      # (1, HW)
                       * p[0:Cout, _PW_COL + ci:_PW_COL + ci + 1])  # (Cout, 1)
        o_ref[n] = yn     # stage un-normalized y in the VMEM-resident out block
    # Pointwise bias omitted for the same BN-cancellation reason.
    y = o_ref[...]                                    # (N, Cout, HW)

    # ---- BatchNorm2d: training-mode batch stats (biased var, eps=1e-5),
    #      single pass of sum / sum-of-squares, all in f32 -------------------
    inv_cnt = 1.0 / float(N * HW)
    s1 = jnp.sum(jnp.sum(y, axis=2, keepdims=True), axis=0, keepdims=True)
    s2 = jnp.sum(jnp.sum(y * y, axis=2, keepdims=True), axis=0, keepdims=True)
    mean = s1 * inv_cnt                               # (1, Cout, 1)
    var = jnp.maximum(s2 * inv_cnt - mean * mean, 0.0)
    inv = jax.lax.rsqrt(var + 1e-5)
    gamma = p[0:Cout, _GAMMA_COL:_GAMMA_COL + 1][None]   # (1, Cout, 1)
    beta = p[0:Cout, _BETA_COL:_BETA_COL + 1][None]      # (1, Cout, 1)
    scale = gamma * inv
    shift = beta - mean * scale

    # ---- affine + ReLU; lane-dense (last dim multiple of 128) store --------
    o_ref[...] = jnp.maximum(y * scale + shift, 0.0)


def dsconv(x_nchw, dw_w, dw_b, pw_w, pw_b, gamma, beta):
    """x_nchw: (N, Cin, H, W). Returns (N, Cout, H, W) float32."""
    del dw_b, pw_b  # cancel exactly under training-mode BatchNorm (see TODO)
    N, Cin, H, W = x_nchw.shape
    Cout = pw_w.shape[1]
    HW = H * W
    NC = N * Cin
    pad = pl.cdiv(W + 1, 128) * 128          # 128-aligned lane pad (>= W+1)

    # Free contiguous reshape only: sublane-dense (N*Cin, H*W) depthwise layout.
    x_flat = x_nchw.reshape(NC, HW).astype(jnp.float32)

    # Pack all parameters into one padded (rows,128) f32 block -> a single DMA.
    rows = pl.cdiv(max(NC, Cout), 8) * 8
    dw_rows = jnp.tile(dw_w.reshape(9, Cin).T, (N, 1))   # (NC, 9), row = n*Cin+ci
    params = jnp.zeros((rows, 128), jnp.float32)
    params = params.at[:NC, _DW_COL:_DW_COL + 9].set(dw_rows.astype(jnp.float32))
    params = params.at[:Cout, _PW_COL:_PW_COL + Cin].set(pw_w.T.astype(jnp.float32))
    params = params.at[:Cout, _GAMMA_COL].set(gamma.astype(jnp.float32))
    params = params.at[:Cout, _BETA_COL].set(beta.astype(jnp.float32))

    kernel = functools.partial(dsconv_kernel, W=W, pad=pad)

    out_flat = pl.pallas_call(
        kernel,
        out_shape=jax.ShapeDtypeStruct((N, Cout, HW), jnp.float32),
        grid_spec=pltpu.PrefetchScalarGridSpec(
            num_scalar_prefetch=0,
            grid=(1,),   # whole (tiny) problem VMEM-resident so the global BN
                         # reduction stays in-kernel; split N on a "parallel"
                         # axis only if the shape grows (v7x megacore).
            in_specs=[
                pl.BlockSpec(memory_space=pl.ANY),             # x stays in HBM
                pl.BlockSpec((rows, 128), lambda i: (0, 0)),   # packed params
            ],
            out_specs=pl.BlockSpec((N, Cout, HW), lambda i: (0, 0, 0)),
            scratch_shapes=[
                pltpu.VMEM((NC, 2 * pad + HW), jnp.float32),   # padded staging
                pltpu.SemaphoreType.DMA(()),
            ],
        ),
        compiler_params=pltpu.CompilerParams(
            dimension_semantics=("arbitrary",)),
    )(x_flat, params)

    # Free minor-dim split back to NCHW.
    return out_flat.reshape(N, Cout, H, W)


def init_params(key, in_channels, out_channels):
    """Deterministic init mirroring PyTorch parameter shapes/ranges."""
    k1, k2, k3, k4 = jax.random.split(key, 4)
    bound_dw = 1.0 / jnp.sqrt(9.0)                       # fan_in = 1*3*3
    bound_pw = 1.0 / jnp.sqrt(float(in_channels))        # fan_in = Cin*1*1
    dw_w = jax.random.uniform(k1, (3, 3, in_channels), jnp.float32,
                              -bound_dw, bound_dw)
    dw_b = jax.random.uniform(k2, (in_channels,), jnp.float32,
                              -bound_dw, bound_dw)
    pw_w = jax.random.uniform(k3, (in_channels, out_channels), jnp.float32,
                              -bound_pw, bound_pw)
    pw_b = jax.random.uniform(k4, (out_channels,), jnp.float32,
                              -bound_pw, bound_pw)
    gamma = jnp.ones((out_channels,), jnp.float32)
    beta = jnp.zeros((out_channels,), jnp.float32)
    return dw_w, dw_b, pw_w, pw_b, gamma, beta


def dsconv_reference(x, dw_w, dw_b, pw_w, pw_b, gamma, beta, eps=1e-5):
    """Pure-JAX reference (explicit padding + shifts, with biases)."""
    N, Cin, H, W = x.shape
    Cout = pw_w.shape[1]
    xp = jnp.pad(x, ((0, 0), (0, 0), (1, 1), (1, 1)))
    dw = jnp.zeros((N, Cin, H, W), jnp.float32)
    for kh in range(3):
        for kw in range(3):
            dw = dw + xp[:, :, kh:kh + H, kw:kw + W] * dw_w[kh, kw][None, :, None, None]
    dw = dw + dw_b[None, :, None, None]
    y = jnp.zeros((N, Cout, H, W), jnp.float32)
    for ci in range(Cin):
        y = y + dw[:, ci:ci + 1] * pw_w[ci][None, :, None, None]
    y = y + pw_b[None, :, None, None]
    mean = jnp.mean(y, axis=(0, 2, 3), keepdims=True)
    var = jnp.mean((y - mean) ** 2, axis=(0, 2, 3), keepdims=True)
    y = (y - mean) * jax.lax.rsqrt(var + eps)
    y = y * gamma[None, :, None, None] + beta[None, :, None, None]
    return jnp.maximum(y, 0.0)


if __name__ == "__main__":
    key = jax.random.PRNGKey(0)
    k_x, k_p = jax.random.split(key)

    N, Cin, H, W = 2, 4, 16, 16
    Cout = 8

    x = jax.random.normal(k_x, (N, Cin, H, W), jnp.float32)
    params = init_params(k_p, Cin, Cout)

    out = jax.block_until_ready(dsconv(x, *params))

    assert out.shape == (N, Cout, H, W), out.shape
    assert jnp.all(jnp.isfinite(out)), "non-finite output"
    assert jnp.all(out >= 0.0), "ReLU violated"

    ref = dsconv_reference(x, *params)
    assert jnp.allclose(out, ref, rtol=1e-4, atol=1e-4), \
        float(jnp.max(jnp.abs(out - ref)))

    print("KERNEL_OK")
</pallas_src>

<mosaic_0001>
module attributes {stable_mosaic.version = 11 : i64} {
  func.func @dsconv_kernel(%arg0: i32, %arg1: memref<8x256xf32, #tpu.memory_space<any>>, %arg2: memref<8x128xf32, #tpu.memory_space<vmem>>, %arg3: memref<2x8x256xf32, #tpu.memory_space<vmem>>, %arg4: memref<8x512xf32, #tpu.memory_space<vmem>>, %arg5: memref<!tpu.dma_semaphore, #tpu.memory_space<semaphore_mem>>) attributes {dimension_semantics = [#tpu.dimension_semantics<arbitrary>], iteration_bounds = array<i64: 1>, scalar_prefetch = 0 : i64, scratch_operands = 2 : i64, tpu.core_type = #tpu.core_type<tc>, window_params = [{}, {pipeline_mode = #tpu.pipeline_mode<synchronous>, transform_indices = @transform_1, window_bounds = array<i64: 8, 128>}, {pipeline_mode = #tpu.pipeline_mode<synchronous>, transform_indices = @transform_2, window_bounds = array<i64: 2, 8, 256>}]} {
    %c0_i32 = arith.constant 0 : i32
    %c128_i32 = arith.constant 128 : i32
    %0 = tpu.memref_slice %arg4[%c0_i32, %c128_i32] : memref<8x512xf32, #tpu.memory_space<vmem>> -> memref<8x256xf32, #tpu.memory_space<vmem>>
    tpu.enqueue_dma source(%arg1 : memref<8x256xf32, #tpu.memory_space<any>>) target(%0 : memref<8x256xf32, #tpu.memory_space<vmem>>) target_semaphore(%arg5 : memref<!tpu.dma_semaphore, #tpu.memory_space<semaphore_mem>>)
    %cst = arith.constant 0.000000e+00 : f32
    %1 = vector.broadcast %cst : f32 to vector<8x128xf32>
    %c0 = arith.constant 0 : index
    %c0_0 = arith.constant 0 : index
    %2 = vector.load %arg4[%c0, %c0_0] : memref<8x512xf32, #tpu.memory_space<vmem>>, vector<8x128xf32>
    tpu.vector_store %arg4[%c0, %c0_0], %1 {strides = array<i32>} : memref<8x512xf32, #tpu.memory_space<vmem>>, vector<8x128xf32>,
    %cst_1 = arith.constant 0.000000e+00 : f32
    %3 = vector.broadcast %cst_1 : f32 to vector<8x128xf32>
    %c0_2 = arith.constant 0 : index
    %c384 = arith.constant 384 : index
    %4 = vector.load %arg4[%c0_2, %c384] : memref<8x512xf32, #tpu.memory_space<vmem>>, vector<8x128xf32>
    tpu.vector_store %arg4[%c0_2, %c384], %3 {strides = array<i32>} : memref<8x512xf32, #tpu.memory_space<vmem>>, vector<8x128xf32>,
    %c0_3 = arith.constant 0 : index
    %c0_4 = arith.constant 0 : index
    %5 = vector.load %arg2[%c0_3, %c0_4] : memref<8x128xf32, #tpu.memory_space<vmem>>, vector<8x128xf32>
    %6 = tpu.iota {dimensions = array<i32: 1>} : vector<8x256xi32>
    %c16_i32 = arith.constant 16 : i32
    %c0_i32_5 = arith.constant 0 : i32
    %7 = arith.cmpi eq, %c16_i32, %c0_i32_5 : i32
    %c1_i32 = arith.constant 1 : i32
    %8 = arith.select %7, %c1_i32, %c16_i32 : i32
    %9 = vector.broadcast %8 : i32 to vector<8x256xi32>
    %10 = arith.remsi %6, %9 : vector<8x256xi32>
    %c0_i32_6 = arith.constant 0 : i32
    %11 = vector.broadcast %c0_i32_6 : i32 to vector<8x256xi32>
    %12 = arith.cmpi ne, %10, %11 : vector<8x256xi32>
    %c0_i32_7 = arith.constant 0 : i32
    %13 = vector.broadcast %c0_i32_7 : i32 to vector<8x256xi32>
    %14 = arith.cmpi slt, %10, %13 : vector<8x256xi32>
    %c0_i32_8 = arith.constant 0 : i32
    %15 = arith.cmpi slt, %8, %c0_i32_8 : i32
    %16 = vector.broadcast %15 : i1 to vector<8x256xi1>
    %17 = vector.broadcast %16 : vector<8x256xi1> to vector<8x256xi1>
    %18 = arith.xori %14, %17 : vector<8x256xi1>
    %19 = arith.andi %18, %12 : vector<8x256xi1>
    %20 = vector.broadcast %8 : i32 to vector<8x256xi32>
    %21 = arith.addi %10, %20 : vector<8x256xi32>
    %22 = arith.select %19, %21, %10 : vector<8x256xi1>, vector<8x256xi32>
    %c1_i32_9 = arith.constant 1 : i32
    %23 = vector.broadcast %c1_i32_9 : i32 to vector<8x256xi32>
    %24 = arith.cmpi sge, %22, %23 : vector<8x256xi32>
    %c14_i32 = arith.constant 14 : i32
    %25 = vector.broadcast %c14_i32 : i32 to vector<8x256xi32>
    %26 = arith.cmpi sle, %22, %25 : vector<8x256xi32>
    %c0_i32_10 = arith.constant 0 : i32
    %c128_i32_11 = arith.constant 128 : i32
    %27 = tpu.memref_slice %arg4[%c0_i32_10, %c128_i32_11] : memref<8x512xf32, #tpu.memory_space<vmem>> -> memref<8x256xf32, #tpu.memory_space<vmem>>
    tpu.wait_dma2 semaphore(%arg5 : memref<!tpu.dma_semaphore, #tpu.memory_space<semaphore_mem>>) src(%arg1 : memref<8x256xf32, #tpu.memory_space<any>>) dst(%27 : memref<8x256xf32, #tpu.memory_space<vmem>>)
    %c0_12 = arith.constant 0 : index
    %c0_13 = arith.constant 0 : index
    %28 = vector.load %arg4[%c0_12, %c0_13] : memref<8x512xf32, #tpu.memory_space<vmem>>, vector<8x512xf32>
    %cst_14 = arith.constant 0.000000e+00 : f32
    %29 = vector.broadcast %cst_14 : f32 to vector<8x256xf32>
    %30 = vector.extract_strided_slice %28 {offsets = [0, 111], sizes = [8, 256], strides = [1, 1]} : vector<8x512xf32> to vector<8x256xf32>
    %31 = vector.extract_strided_slice %5 {offsets = [0, 0], sizes = [8, 1], strides = [1, 1]} : vector<8x128xf32> to vector<8x1xf32>
    %32 = vector.broadcast %31 : vector<8x1xf32> to vector<8x256xf32>
    %33 = arith.mulf %30, %32 : vector<8x256xf32>
    %34 = arith.addf %29, %33 : vector<8x256xf32>
    %35 = vector.extract_strided_slice %28 {offsets = [0, 127], sizes = [8, 256], strides = [1, 1]} : vector<8x512xf32> to vector<8x256xf32>
    %36 = vector.extract_strided_slice %5 {offsets = [0, 3], sizes = [8, 1], strides = [1, 1]} : vector<8x128xf32> to vector<8x1xf32>
    %37 = vector.broadcast %36 : vector<8x1xf32> to vector<8x256xf32>
    %38 = arith.mulf %35, %37 : vector<8x256xf32>
    %39 = arith.addf %34, %38 : vector<8x256xf32>
    %40 = vector.extract_strided_slice %28 {offsets = [0, 143], sizes = [8, 256], strides = [1, 1]} : vector<8x512xf32> to vector<8x256xf32>
    %41 = vector.extract_strided_slice %5 {offsets = [0, 6], sizes = [8, 1], strides = [1, 1]} : vector<8x128xf32> to vector<8x1xf32>
    %42 = vector.broadcast %41 : vector<8x1xf32> to vector<8x256xf32>
    %43 = arith.mulf %40, %42 : vector<8x256xf32>
    %44 = arith.addf %39, %43 : vector<8x256xf32>
    %cst_15 = arith.constant 0.000000e+00 : f32
    %45 = vector.broadcast %cst_15 : f32 to vector<8x256xf32>
    %46 = vector.extract_strided_slice %28 {offsets = [0, 112], sizes = [8, 256], strides = [1, 1]} : vector<8x512xf32> to vector<8x256xf32>
    %47 = vector.extract_strided_slice %5 {offsets = [0, 1], sizes = [8, 1], strides = [1, 1]} : vector<8x128xf32> to vector<8x1xf32>
    %48 = vector.broadcast %47 : vector<8x1xf32> to vector<8x256xf32>
    %49 = arith.mulf %46, %48 : vector<8x256xf32>
    %50 = arith.addf %45, %49 : vector<8x256xf32>
    %51 = vector.extract_strided_slice %28 {offsets = [0, 128], sizes = [8, 256], strides = [1, 1]} : vector<8x512xf32> to vector<8x256xf32>
    %52 = vector.extract_strided_slice %5 {offsets = [0, 4], sizes = [8, 1], strides = [1, 1]} : vector<8x128xf32> to vector<8x1xf32>
    %53 = vector.broadcast %52 : vector<8x1xf32> to vector<8x256xf32>
    %54 = arith.mulf %51, %53 : vector<8x256xf32>
    %55 = arith.addf %50, %54 : vector<8x256xf32>
    %56 = vector.extract_strided_slice %28 {offsets = [0, 144], sizes = [8, 256], strides = [1, 1]} : vector<8x512xf32> to vector<8x256xf32>
    %57 = vector.extract_strided_slice %5 {offsets = [0, 7], sizes = [8, 1], strides = [1, 1]} : vector<8x128xf32> to vector<8x1xf32>
    %58 = vector.broadcast %57 : vector<8x1xf32> to vector<8x256xf32>
    %59 = arith.mulf %56, %58 : vector<8x256xf32>
    %60 = arith.addf %55, %59 : vector<8x256xf32>
    %cst_16 = arith.constant 0.000000e+00 : f32
    %61 = vector.broadcast %cst_16 : f32 to vector<8x256xf32>
    %62 = vector.extract_strided_slice %28 {offsets = [0, 113], sizes = [8, 256], strides = [1, 1]} : vector<8x512xf32> to vector<8x256xf32>
    %63 = vector.extract_strided_slice %5 {offsets = [0, 2], sizes = [8, 1], strides = [1, 1]} : vector<8x128xf32> to vector<8x1xf32>
    %64 = vector.broadcast %63 : vector<8x1xf32> to vector<8x256xf32>
    %65 = arith.mulf %62, %64 : vector<8x256xf32>
    %66 = arith.addf %61, %65 : vector<8x256xf32>
    %67 = vector.extract_strided_slice %28 {offsets = [0, 129], sizes = [8, 256], strides = [1, 1]} : vector<8x512xf32> to vector<8x256xf32>
    %68 = vector.extract_strided_slice %5 {offsets = [0, 5], sizes = [8, 1], strides = [1, 1]} : vector<8x128xf32> to vector<8x1xf32>
    %69 = vector.broadcast %68 : vector<8x1xf32> to vector<8x256xf32>
    %70 = arith.mulf %67, %69 : vector<8x256xf32>
    %71 = arith.addf %66, %70 : vector<8x256xf32>
    %72 = vector.extract_strided_slice %28 {offsets = [0, 145], sizes = [8, 256], strides = [1, 1]} : vector<8x512xf32> to vector<8x256xf32>
    %73 = vector.extract_strided_slice %5 {offsets = [0, 8], sizes = [8, 1], strides = [1, 1]} : vector<8x128xf32> to vector<8x1xf32>
    %74 = vector.broadcast %73 : vector<8x1xf32> to vector<8x256xf32>
    %75 = arith.mulf %72, %74 : vector<8x256xf32>
    %76 = arith.addf %71, %75 : vector<8x256xf32>
    %cst_17 = arith.constant 0.000000e+00 : f32
    %77 = vector.broadcast %cst_17 : f32 to vector<8x256xf32>
    %78 = arith.select %24, %44, %77 : vector<8x256xi1>, vector<8x256xf32>
    %79 = arith.addf %60, %78 : vector<8x256xf32>
    %cst_18 = arith.constant 0.000000e+00 : f32
    %80 = vector.broadcast %cst_18 : f32 to vector<8x256xf32>
    %81 = arith.select %26, %76, %80 : vector<8x256xi1>, vector<8x256xf32>
    %82 = arith.addf %79, %81 : vector<8x256xf32>
    %cst_19 = arith.constant 0.000000e+00 : f32
    %83 = vector.broadcast %cst_19 : f32 to vector<8x256xf32>
    %84 = vector.extract_strided_slice %82 {offsets = [0, 0], sizes = [1, 256], strides = [1, 1]} : vector<8x256xf32> to vector<1x256xf32>
    %85 = vector.extract_strided_slice %5 {offsets = [0, 16], sizes = [8, 1], strides = [1, 1]} : vector<8x128xf32> to vector<8x1xf32>
    %86 = vector.broadcast %84 : vector<1x256xf32> to vector<8x256xf32>
    %87 = vector.broadcast %85 : vector<8x1xf32> to vector<8x256xf32>
    %88 = arith.mulf %86, %87 : vector<8x256xf32>
    %89 = arith.addf %83, %88 : vector<8x256xf32>
    %90 = vector.extract_strided_slice %82 {offsets = [1, 0], sizes = [1, 256], strides = [1, 1]} : vector<8x256xf32> to vector<1x256xf32>
    %91 = vector.extract_strided_slice %5 {offsets = [0, 17], sizes = [8, 1], strides = [1, 1]} : vector<8x128xf32> to vector<8x1xf32>
    %92 = vector.broadcast %90 : vector<1x256xf32> to vector<8x256xf32>
    %93 = vector.broadcast %91 : vector<8x1xf32> to vector<8x256xf32>
    %94 = arith.mulf %92, %93 : vector<8x256xf32>
    %95 = arith.addf %89, %94 : vector<8x256xf32>
    %96 = vector.extract_strided_slice %82 {offsets = [2, 0], sizes = [1, 256], strides = [1, 1]} : vector<8x256xf32> to vector<1x256xf32>
    %97 = vector.extract_strided_slice %5 {offsets = [0, 18], sizes = [8, 1], strides = [1, 1]} : vector<8x128xf32> to vector<8x1xf32>
    %98 = vector.broadcast %96 : vector<1x256xf32> to vector<8x256xf32>
    %99 = vector.broadcast %97 : vector<8x1xf32> to vector<8x256xf32>
    %100 = arith.mulf %98, %99 : vector<8x256xf32>
    %101 = arith.addf %95, %100 : vector<8x256xf32>
    %102 = vector.extract_strided_slice %82 {offsets = [3, 0], sizes = [1, 256], strides = [1, 1]} : vector<8x256xf32> to vector<1x256xf32>
    %103 = vector.extract_strided_slice %5 {offsets = [0, 19], sizes = [8, 1], strides = [1, 1]} : vector<8x128xf32> to vector<8x1xf32>
    %104 = vector.broadcast %102 : vector<1x256xf32> to vector<8x256xf32>
    %105 = vector.broadcast %103 : vector<8x1xf32> to vector<8x256xf32>
    %106 = arith.mulf %104, %105 : vector<8x256xf32>
    %107 = arith.addf %101, %106 : vector<8x256xf32>
    %c0_20 = arith.constant 0 : index
    %c0_21 = arith.constant 0 : index
    %c0_22 = arith.constant 0 : index
    %108 = vector.load %arg3[%c0_20, %c0_21, %c0_22] : memref<2x8x256xf32, #tpu.memory_space<vmem>>, vector<1x8x256xf32>
    %109 = vector.shape_cast %108 : vector<1x8x256xf32> to vector<8x256xf32>
    %110 = vector.shape_cast %107 : vector<8x256xf32> to vector<1x8x256xf32>
    tpu.vector_store %arg3[%c0_20, %c0_21, %c0_22], %110 {strides = array<i32>} : memref<2x8x256xf32, #tpu.memory_space<vmem>>, vector<1x8x256xf32>,
    %cst_23 = arith.constant 0.000000e+00 : f32
    %111 = vector.broadcast %cst_23 : f32 to vector<8x256xf32>
    %112 = vector.extract_strided_slice %82 {offsets = [4, 0], sizes = [1, 256], strides = [1, 1]} : vector<8x256xf32> to vector<1x256xf32>
    %113 = vector.extract_strided_slice %5 {offsets = [0, 16], sizes = [8, 1], strides = [1, 1]} : vector<8x128xf32> to vector<8x1xf32>
    %114 = vector.broadcast %112 : vector<1x256xf32> to vector<8x256xf32>
    %115 = vector.broadcast %113 : vector<8x1xf32> to vector<8x256xf32>
    %116 = arith.mulf %114, %115 : vector<8x256xf32>
    %117 = arith.addf %111, %116 : vector<8x256xf32>
    %118 = vector.extract_strided_slice %82 {offsets = [5, 0], sizes = [1, 256], strides = [1, 1]} : vector<8x256xf32> to vector<1x256xf32>
    %119 = vector.extract_strided_slice %5 {offsets = [0, 17], sizes = [8, 1], strides = [1, 1]} : vector<8x128xf32> to vector<8x1xf32>
    %120 = vector.broadcast %118 : vector<1x256xf32> to vector<8x256xf32>
    %121 = vector.broadcast %119 : vector<8x1xf32> to vector<8x256xf32>
    %122 = arith.mulf %120, %121 : vector<8x256xf32>
    %123 = arith.addf %117, %122 : vector<8x256xf32>
    %124 = vector.extract_strided_slice %82 {offsets = [6, 0], sizes = [1, 256], strides = [1, 1]} : vector<8x256xf32> to vector<1x256xf32>
    %125 = vector.extract_strided_slice %5 {offsets = [0, 18], sizes = [8, 1], strides = [1, 1]} : vector<8x128xf32> to vector<8x1xf32>
    %126 = vector.broadcast %124 : vector<1x256xf32> to vector<8x256xf32>
    %127 = vector.broadcast %125 : vector<8x1xf32> to vector<8x256xf32>
    %128 = arith.mulf %126, %127 : vector<8x256xf32>
    %129 = arith.addf %123, %128 : vector<8x256xf32>
    %130 = vector.extract_strided_slice %82 {offsets = [7, 0], sizes = [1, 256], strides = [1, 1]} : vector<8x256xf32> to vector<1x256xf32>
    %131 = vector.extract_strided_slice %5 {offsets = [0, 19], sizes = [8, 1], strides = [1, 1]} : vector<8x128xf32> to vector<8x1xf32>
    %132 = vector.broadcast %130 : vector<1x256xf32> to vector<8x256xf32>
    %133 = vector.broadcast %131 : vector<8x1xf32> to vector<8x256xf32>
    %134 = arith.mulf %132, %133 : vector<8x256xf32>
    %135 = arith.addf %129, %134 : vector<8x256xf32>
    %c1 = arith.constant 1 : index
    %c0_24 = arith.constant 0 : index
    %c0_25 = arith.constant 0 : index
    %136 = vector.load %arg3[%c1, %c0_24, %c0_25] : memref<2x8x256xf32, #tpu.memory_space<vmem>>, vector<1x8x256xf32>
    %137 = vector.shape_cast %136 : vector<1x8x256xf32> to vector<8x256xf32>
    %138 = vector.shape_cast %135 : vector<8x256xf32> to vector<1x8x256xf32>
    tpu.vector_store %arg3[%c1, %c0_24, %c0_25], %138 {strides = array<i32>} : memref<2x8x256xf32, #tpu.memory_space<vmem>>, vector<1x8x256xf32>,
    %c0_26 = arith.constant 0 : index
    %c0_27 = arith.constant 0 : index
    %c0_28 = arith.constant 0 : index
    %139 = vector.load %arg3[%c0_26, %c0_27, %c0_28] : memref<2x8x256xf32, #tpu.memory_space<vmem>>, vector<2x8x256xf32>
    %cst_29 = arith.constant dense<0.000000e+00> : vector<2x8xf32>
    %140 = vector.multi_reduction <add>, %139, %cst_29 [2] : vector<2x8x256xf32> to vector<2x8xf32>
    %141 = vector.shape_cast %140 : vector<2x8xf32> to vector<2x8x1xf32>
    %cst_30 = arith.constant dense<0.000000e+00> : vector<8x1xf32>
    %142 = vector.multi_reduction <add>, %141, %cst_30 [0] : vector<2x8x1xf32> to vector<8x1xf32>
    %143 = vector.shape_cast %142 : vector<8x1xf32> to vector<1x8x1xf32>
    %144 = arith.mulf %139, %139 : vector<2x8x256xf32>
    %cst_31 = arith.constant dense<0.000000e+00> : vector<2x8xf32>
    %145 = vector.multi_reduction <add>, %144, %cst_31 [2] : vector<2x8x256xf32> to vector<2x8xf32>
    %146 = vector.shape_cast %145 : vector<2x8xf32> to vector<2x8x1xf32>
    %cst_32 = arith.constant dense<0.000000e+00> : vector<8x1xf32>
    %147 = vector.multi_reduction <add>, %146, %cst_32 [0] : vector<2x8x1xf32> to vector<8x1xf32>
    %148 = vector.shape_cast %147 : vector<8x1xf32> to vector<1x8x1xf32>
    %cst_33 = arith.constant 0.001953125 : f32
    %149 = vector.broadcast %cst_33 : f32 to vector<1x8x1xf32>
    %150 = arith.mulf %143, %149 : vector<1x8x1xf32>
    %cst_34 = arith.constant 0.001953125 : f32
    %151 = vector.broadcast %cst_34 : f32 to vector<1x8x1xf32>
    %152 = arith.mulf %148, %151 : vector<1x8x1xf32>
    %153 = arith.mulf %150, %150 : vector<1x8x1xf32>
    %154 = arith.subf %152, %153 : vector<1x8x1xf32>
    %cst_35 = arith.constant 0.000000e+00 : f32
    %155 = vector.broadcast %cst_35 : f32 to vector<1x8x1xf32>
    %156 = arith.maximumf %154, %155 : vector<1x8x1xf32>
    %cst_36 = arith.constant 9.99999974E-6 : f32
    %157 = vector.broadcast %cst_36 : f32 to vector<1x8x1xf32>
    %158 = arith.addf %156, %157 : vector<1x8x1xf32>
    %159 = math.rsqrt %158 : vector<1x8x1xf32>
    %160 = vector.extract_strided_slice %5 {offsets = [0, 24], sizes = [8, 1], strides = [1, 1]} : vector<8x128xf32> to vector<8x1xf32>
    %161 = vector.shape_cast %160 : vector<8x1xf32> to vector<1x8x1xf32>
    %162 = vector.extract_strided_slice %5 {offsets = [0, 25], sizes = [8, 1], strides = [1, 1]} : vector<8x128xf32> to vector<8x1xf32>
    %163 = vector.shape_cast %162 : vector<8x1xf32> to vector<1x8x1xf32>
    %164 = arith.mulf %161, %159 : vector<1x8x1xf32>
    %165 = arith.mulf %150, %164 : vector<1x8x1xf32>
    %166 = arith.subf %163, %165 : vector<1x8x1xf32>
    %167 = vector.broadcast %164 : vector<1x8x1xf32> to vector<2x8x256xf32>
    %168 = arith.mulf %139, %167 : vector<2x8x256xf32>
    %169 = vector.broadcast %166 : vector<1x8x1xf32> to vector<2x8x256xf32>
    %170 = arith.addf %168, %169 : vector<2x8x256xf32>
    %cst_37 = arith.constant 0.000000e+00 : f32
    %171 = vector.broadcast %cst_37 : f32 to vector<2x8x256xf32>
    %172 = arith.maximumf %170, %171 : vector<2x8x256xf32>
    %c0_38 = arith.constant 0 : index
    %c0_39 = arith.constant 0 : index
    %c0_40 = arith.constant 0 : index
    %173 = vector.load %arg3[%c0_38, %c0_39, %c0_40] : memref<2x8x256xf32, #tpu.memory_space<vmem>>, vector<2x8x256xf32>
    tpu.vector_store %arg3[%c0_38, %c0_39, %c0_40], %172 {strides = array<i32>} : memref<2x8x256xf32, #tpu.memory_space<vmem>>, vector<2x8x256xf32>,
    return
  }
  func.func @transform_1(%arg0: i32) -> (i32, i32) {
    %c0_i32 = arith.constant 0 : i32
    %c0_i32_0 = arith.constant 0 : i32
    %c0_i32_1 = arith.constant 0 : i32
    return %c0_i32, %c0_i32_0 : i32, i32
  }
  func.func @transform_2(%arg0: i32) -> (i32, i32, i32) {
    %c0_i32 = arith.constant 0 : i32
    %c0_i32_0 = arith.constant 0 : i32
    %c0_i32_1 = arith.constant 0 : i32
    %c0_i32_2 = arith.constant 0 : i32
    return %c0_i32, %c0_i32_0, %c0_i32_1 : i32, i32, i32
  }
}

</mosaic_0001>

<llo_original>
// kernel: tpu_custom_call.1
$region0: #{tpu_custom_call.1}
  #allocation0 [shape = 'u32[]', space=smem, size = 0x4, offset = 0x4, fixed_abs, tag = 'smem constant byte address 0x4 - core index']
  #allocation1 [shape = 'u32[144,128]{1,0:T(1,128)}', space=vmem, size = 0x12000, scoped, tag = 'internal scratch']
  #allocation2 [shape = 'f32[8,512]{1,0:T(8,128)}', space=vmem, size = 0x4000, scoped, tag = 'scratch operand']
  #allocation3 [shape = 's32[1]{0}', space=sflag, size = 0x4, scoped, tag = 'scratch operand']
  #allocation8 [shape = 's32[]', space=sflag, size = 0x4, offset = 0, fixed_abs, tag = 'sflag constant byte address 0x0 - dummy sync flag']
  #allocation9 [shape = 's32[]', space=sflag, size = 0x4, offset = 0, fixed_abs, tag = 'sflag constant byte address 0x0 - dummy sync flag']
  #allocation10 [shape = 'u32[]', space=smem, size = 0x4, offset = 0x44, fixed_abs, tag = 'smem constant byte address 0x44 - assertion arg 0']
  #allocation11 [shape = 'u32[]', space=smem, size = 0x4, offset = 0x48, fixed_abs, tag = 'smem constant byte address 0x48 - assertion arg 1']
  %s0 = inlined_call_operand.hbm [shape: f32[8,256], index: 0, kind: input, shape index: {}]
  %s1 = inlined_call_operand.hbm [shape: f32[8,128], index: 1, kind: input, shape index: {}]
  %s2 = inlined_call_operand.hbm [shape: f32[2,8,256], index: 2, kind: output, shape index: {}]
  %s3 = sld [smem:[#allocation0]]
  $region22: #{tpu_custom_call.1} parent=0
    _
  %s5 = ssub.s32 1, %s3
  %s6 = scalar_select 0, %s5, %s3
  $region1: #{tpu_custom_call.1} parent=0
    #allocation4 [shape = 'u8[4096]{0}', space=vmem, size = 0x1000, scoped, tag = 'input window, operand 1, single buffered']
    #allocation5 [shape = 's32[1]{0}', space=sflag, size = 0x4, scoped, tag = 'scoped memory for tpu_custom_call.1']
    #allocation6 [shape = 's32[1]{0}', space=sflag, size = 0x4, scoped, tag = 'scoped memory for tpu_custom_call.1']
    #allocation7 [shape = 'u8[16384]{0}', space=vmem, size = 0x4000, scoped, tag = 'output window, operand 0, single buffered']
    %7 = vsyncpa [#allocation5], 0
    %8 = vsyncpa [#allocation6], 0
    // Predicated region
    $region2: #{tpu_custom_call.1} parent=1 // pred_check
      _
    $region3: #{tpu_custom_call.1} parent=1 // pred_check_branch
      %10 = sbr.rel (0) target = $region5
    $region4: #{tpu_custom_call.1} parent=1 // pred_region
      %s12 = ssub.s32 128, 128
      %13 = vsyncadd [#allocation5], %s12
      %s15 = sshll.u32 [#allocation4], 4
      %s16 = int_to_ptr.vmem [resolvable:$true] %s15
      %18 = dma.hbm_to_vmem [thread:$0]  %s1, 128, %s16, [#allocation5]
    $region5: #{tpu_custom_call.1} parent=1 // pred_fallthru
      _
    // Predicated region
    $region6: #{tpu_custom_call.1} parent=1 // pred_check
      _
    $region7: #{tpu_custom_call.1} parent=1 // pred_check_branch
      %20 = sbr.rel (0) target = $region9
    $region8: #{tpu_custom_call.1} parent=1 // pred_region
      %21 = dma.done [#allocation5], 128
    $region9: #{tpu_custom_call.1} parent=1 // pred_fallthru
      _
    %s22 = scalar_lea.vmem [#allocation2], 8
    // Predicated region
    $region10: #{tpu_custom_call.1} parent=1 // pred_check
      _
    $region11: #{tpu_custom_call.1} parent=1 // pred_check_branch
      %24 = sbr.rel target = $region13
    $region12: #{tpu_custom_call.1} parent=1 // pred_region
      %25 = sst [smem:[#allocation10]] [#allocation9]
      %26 = sst [smem:[#allocation11]] [#allocation8]
    $region13: #{tpu_custom_call.1} parent=1 // pred_fallthru
      _
    %28 = shalt.err (0)
    %s30 = sshll.u32 %s22, 4
    %s31 = int_to_ptr.vmem [resolvable:$true] %s30
    %33 = dma.hbm_to_vmem [thread:$0]  %s0, 256, %s31, [#allocation3]
    %34 = vst [vmem:[#allocation2] sm:$0xff] 0.0
    %35 = vst [vmem:[#allocation2 + $0x18] sm:$0xff] 0.0
    %v36 = vld [vmem:[#allocation4] sm:$0xff]
    %v37 = vlaneseq
    %v38 = vand.u32 %v37, 127
    %v39 = vadd.s32 %v38, 128
    %vm40 = vcmp.lt.s32.totalorder %v38, 0
    %v41 = vsub.s32 0, %v38
    %v42 = vsel %vm40, %v41, %v38
    %v43 = vshrl.u32 %v42, 4
    %v44 = vand.u32 %v42, 15
    %v45 = vsub.s32 0, %v44
    %v46 = vsel %vm40, %v45, %v44
    %vm47 = vcmp.lt.s32.totalorder %v39, 0
    %v48 = vsub.s32 0, %v39
    %v49 = vsel %vm47, %v48, %v39
    %v50 = vshrl.u32 %v49, 4
    %v51 = vand.u32 %v49, 15
    %v52 = vsub.s32 0, %v51
    %v53 = vsel %vm47, %v52, %v51
    %vm54 = vcmp.ne.s32.totalorder %v46, 0
    %vm55 = vcmp.ne.s32.totalorder %v53, 0
    %vm56 = vcmp.lt.s32.totalorder %v46, 0
    %vm57 = vcmp.lt.s32.totalorder %v53, 0
    %vm58 = vmand %vm56, %vm54
    %vm59 = vmand %vm57, %vm55
    %v60 = vadd.s32 %v46, 16
    %v61 = vadd.s32 %v53, 16
    %v62 = vsel %vm58, %v60, %v46
    %v63 = vsel %vm59, %v61, %v53
    %vm64 = vcmp.ge.s32.totalorder %v62, 1
    %vm65 = vcmp.ge.s32.totalorder %v63, 1
    %vm66 = vcmp.le.s32.totalorder %v62, 14
    %vm67 = vcmp.le.s32.totalorder %v63, 14
    %s68 = smul.u32 8, 1
    %s69 = smul.u32 %s68, 2
    %s70 = sshll.u32 %s69, 4
    %71 = dma.done [#allocation3], %s70
    %v72 = vld [vmem:[#allocation2] sm:$0xff]
    %v73 = vld [vmem:[#allocation2 + $0x8] sm:$0xff]
    %v74 = vld [vmem:[#allocation2 + $0x10] sm:$0xff]
    %v75 = vld [vmem:[#allocation2 + $0x18] sm:$0xff]
    %77 = vset.pattern.permute.xlu0 0
    %78 = vperm.xlu0 %77, %v36
    %v79 = vpop.permute.xlu0 %78
    %v81 = vmul.f32 %v72, %v79
    %v82 = vmul.f32 %v73, %v79
    %v83 = vmul.f32 %v74, %v79
    %v84 = vadd.f32 %v81, 0.0
    %v85 = vadd.f32 %v82, 0.0
    %v86 = vadd.f32 %v83, 0.0
    %87 = vset.pattern.permute.xlu0 3
    %88 = vperm.xlu0 %87, %v36
    %v89 = vpop.permute.xlu0 %88
    %v91 = vmul.f32 %v72, %v89
    %v92 = vmul.f32 %v73, %v89
    %v93 = vmul.f32 %v74, %v89
    %97 = vrot.lane.b32.xlu0 %v91, 112
    %v98 = vpop.permute.xlu0 %97
    %99 = vrot.lane.b32.xlu0 %v92, 112
    %v100 = vpop.permute.xlu0 %99
    %101 = vrot.lane.b32.xlu0 %v93, 112
    %v102 = vpop.permute.xlu0 %101
    %vm103 = vcmask 916480
    %v104 = vsel %vm103, %v98, %v100
    %v105 = vsel %vm103, %v100, %v102
    %v109 = vadd.f32 %v84, %v104
    %v110 = vadd.f32 %v85, %v105
    %v111 = vadd.f32 %v86, %v102
    %112 = vset.pattern.permute.xlu0 6
    %113 = vperm.xlu0 %112, %v36
    %v114 = vpop.permute.xlu0 %113
    %v116 = vmul.f32 %v73, %v114
    %v117 = vmul.f32 %v74, %v114
    %v118 = vmul.f32 %v75, %v114
    %122 = vrot.lane.b32.xlu0 %v116, 96
    %v123 = vpop.permute.xlu0 %122
    %124 = vrot.lane.b32.xlu0 %v117, 96
    %v125 = vpop.permute.xlu0 %124
    %126 = vrot.lane.b32.xlu0 %v118, 96
    %v127 = vpop.permute.xlu0 %126
    %vm128 = vcmask 785408
    %v129 = vsel %vm128, %v123, %v125
    %v130 = vsel %vm128, %v125, %v127
    %v134 = vadd.f32 %v109, %v123
    %v135 = vadd.f32 %v110, %v129
    %v136 = vadd.f32 %v111, %v130
    %137 = vset.pattern.permute.xlu0 1
    %138 = vperm.xlu0 %137, %v36
    %v139 = vpop.permute.xlu0 %138
    %v141 = vmul.f32 %v72, %v139
    %v142 = vmul.f32 %v73, %v139
    %v143 = vmul.f32 %v74, %v139
    %v144 = vadd.f32 %v141, 0.0
    %v145 = vadd.f32 %v142, 0.0
    %v146 = vadd.f32 %v143, 0.0
    %147 = vset.pattern.permute.xlu0 4
    %148 = vperm.xlu0 %147, %v36
    %v149 = vpop.permute.xlu0 %148
    %v151 = vmul.f32 %v73, %v149
    %v152 = vmul.f32 %v74, %v149
    %155 = vrot.lane.b32.xlu0 %v151, 112
    %v156 = vpop.permute.xlu0 %155
    %157 = vrot.lane.b32.xlu0 %v152, 112
    %v158 = vpop.permute.xlu0 %157
    %v159 = vsel %vm103, %v156, %v158
    %v163 = vadd.f32 %v144, %v156
    %v164 = vadd.f32 %v145, %v159
    %v165 = vadd.f32 %v146, %v158
    %166 = vset.pattern.permute.xlu0 7
    %167 = vperm.xlu0 %166, %v36
    %v168 = vpop.permute.xlu0 %167
    %v170 = vmul.f32 %v73, %v168
    %v171 = vmul.f32 %v74, %v168
    %v172 = vmul.f32 %v75, %v168
    %176 = vrot.lane.b32.xlu0 %v170, 96
    %v177 = vpop.permute.xlu0 %176
    %178 = vrot.lane.b32.xlu0 %v171, 96
    %v179 = vpop.permute.xlu0 %178
    %180 = vrot.lane.b32.xlu0 %v172, 96
    %v181 = vpop.permute.xlu0 %180
    %v182 = vsel %vm128, %v177, %v179
    %v183 = vsel %vm128, %v179, %v181
    %v187 = vadd.f32 %v163, %v177
    %v188 = vadd.f32 %v164, %v182
    %v189 = vadd.f32 %v165, %v183
    %190 = vset.pattern.permute.xlu0 2
    %191 = vperm.xlu0 %190, %v36
    %v192 = vpop.permute.xlu0 %191
    %v194 = vmul.f32 %v72, %v192
    %v195 = vmul.f32 %v73, %v192
    %v196 = vmul.f32 %v74, %v192
    %v197 = vadd.f32 %v194, 0.0
    %v198 = vadd.f32 %v195, 0.0
    %v199 = vadd.f32 %v196, 0.0
    %200 = vset.pattern.permute.xlu0 5
    %201 = vperm.xlu0 %200, %v36
    %v202 = vpop.permute.xlu0 %201
    %v204 = vmul.f32 %v73, %v202
    %v205 = vmul.f32 %v74, %v202
    %v206 = vmul.f32 %v75, %v202
    %210 = vrot.lane.b32.xlu0 %v204, 112
    %v211 = vpop.permute.xlu0 %210
    %212 = vrot.lane.b32.xlu0 %v205, 112
    %v213 = vpop.permute.xlu0 %212
    %214 = vrot.lane.b32.xlu0 %v206, 112
    %v215 = vpop.permute.xlu0 %214
    %v216 = vsel %vm103, %v211, %v213
    %v217 = vsel %vm103, %v213, %v215
    %v221 = vadd.f32 %v197, %v211
    %v222 = vadd.f32 %v198, %v216
    %v223 = vadd.f32 %v199, %v217
    %224 = vset.pattern.permute.xlu0 8
    %225 = vperm.xlu0 %224, %v36
    %v226 = vpop.permute.xlu0 %225
    %v228 = vmul.f32 %v73, %v226
    %v229 = vmul.f32 %v74, %v226
    %v230 = vmul.f32 %v75, %v226
    %234 = vrot.lane.b32.xlu0 %v228, 96
    %v235 = vpop.permute.xlu0 %234
    %236 = vrot.lane.b32.xlu0 %v229, 96
    %v237 = vpop.permute.xlu0 %236
    %238 = vrot.lane.b32.xlu0 %v230, 96
    %v239 = vpop.permute.xlu0 %238
    %v240 = vsel %vm128, %v235, %v237
    %v241 = vsel %vm128, %v237, %v239
    %v245 = vadd.f32 %v221, %v235
    %v246 = vadd.f32 %v222, %v240
    %v247 = vadd.f32 %v223, %v241
    %251 = vrot.lane.b32.xlu0 %v134, 17
    %v252 = vpop.permute.xlu0 %251
    %253 = vrot.lane.b32.xlu0 %v135, 17
    %v254 = vpop.permute.xlu0 %253
    %255 = vrot.lane.b32.xlu0 %v136, 17
    %v256 = vpop.permute.xlu0 %255
    %vm257 = vcmask 138240
    %v258 = vsel %vm257, %v252, %v254
    %v259 = vsel %vm257, %v254, %v256
    %v262 = vsel %vm64, %v258, 0.0
    %v263 = vsel %vm65, %v259, 0.0
    %266 = vrot.lane.b32.xlu0 %v262, 112
    %v267 = vpop.permute.xlu0 %266
    %268 = vrot.lane.b32.xlu0 %v263, 112
    %v269 = vpop.permute.xlu0 %268
    %v270 = vsel %vm103, %v267, %v269
    %v274 = vadd.f32 %v187, %v267
    %v275 = vadd.f32 %v188, %v270
    %v276 = vadd.f32 %v189, %v269
    %280 = vrot.lane.b32.xlu0 %v245, 15
    %v281 = vpop.permute.xlu0 %280
    %282 = vrot.lane.b32.xlu0 %v246, 15
    %v283 = vpop.permute.xlu0 %282
    %284 = vrot.lane.b32.xlu0 %v247, 15
    %v285 = vpop.permute.xlu0 %284
    %vm286 = vcmask 121856
    %v287 = vsel %vm286, %v281, %v283
    %v288 = vsel %vm286, %v283, %v285
    %v291 = vsel %vm66, %v287, 0.0
    %v292 = vsel %vm67, %v288, 0.0
    %295 = vrot.lane.b32.xlu0 %v291, 112
    %v296 = vpop.permute.xlu0 %295
    %297 = vrot.lane.b32.xlu0 %v292, 112
    %v298 = vpop.permute.xlu0 %297
    %v299 = vsel %vm103, %v296, %v298
    %v303 = vadd.f32 %v274, %v296
    %v304 = vadd.f32 %v275, %v299
    %v305 = vadd.f32 %v276, %v298
    %v306 = vlaneseq
    %v307 = vshrl.u32 %v306, 7
    %v308 = vsub.s32 0, %v307
    %v309 = vrot.slane %v303, %v308
    %v310 = vlaneseq
    %v311 = vshrl.u32 %v310, 7
    %v312 = vsub.s32 0, %v311
    %v313 = vrot.slane %v304, %v312
    %v314 = vlaneseq
    %v315 = vshrl.u32 %v314, 7
    %v316 = vsub.s32 0, %v315
    %v317 = vrot.slane %v305, %v316
    %318 = vset.pattern.permute.xlu0 16
    %319 = vperm.xlu0 %318, %v36
    %v320 = vpop.permute.xlu0 %319
    %v322 = vmul.f32 %v309, %v320
    %v323 = vmul.f32 %v313, %v320
    %v324 = vmul.f32 %v317, %v320
    %v325 = vadd.f32 %v322, 0.0
    %v326 = vadd.f32 %v323, 0.0
    %v327 = vadd.f32 %v324, 0.0
    %v328 = vlaneseq
    %v329 = vshrl.u32 %v328, 7
    %v330 = vsub.s32 1, %v329
    %v331 = vrot.slane %v303, %v330
    %v332 = vlaneseq
    %v333 = vshrl.u32 %v332, 7
    %v334 = vsub.s32 1, %v333
    %v335 = vrot.slane %v304, %v334
    %v336 = vlaneseq
    %v337 = vshrl.u32 %v336, 7
    %v338 = vsub.s32 1, %v337
    %v339 = vrot.slane %v305, %v338
    %340 = vset.pattern.permute.xlu0 17
    %341 = vperm.xlu0 %340, %v36
    %v342 = vpop.permute.xlu0 %341
    %v344 = vmul.f32 %v331, %v342
    %v345 = vmul.f32 %v335, %v342
    %v346 = vmul.f32 %v339, %v342
    %v347 = vadd.f32 %v325, %v344
    %v348 = vadd.f32 %v326, %v345
    %v349 = vadd.f32 %v327, %v346
    %v350 = vlaneseq
    %v351 = vshrl.u32 %v350, 7
    %v352 = vsub.s32 2, %v351
    %v353 = vrot.slane %v303, %v352
    %v354 = vlaneseq
    %v355 = vshrl.u32 %v354, 7
    %v356 = vsub.s32 2, %v355
    %v357 = vrot.slane %v304, %v356
    %v358 = vlaneseq
    %v359 = vshrl.u32 %v358, 7
    %v360 = vsub.s32 2, %v359
    %v361 = vrot.slane %v305, %v360
    %362 = vset.pattern.permute.xlu0 18
    %363 = vperm.xlu0 %362, %v36
    %v364 = vpop.permute.xlu0 %363
    %v366 = vmul.f32 %v353, %v364
    %v367 = vmul.f32 %v357, %v364
    %v368 = vmul.f32 %v361, %v364
    %v369 = vadd.f32 %v347, %v366
    %v370 = vadd.f32 %v348, %v367
    %v371 = vadd.f32 %v349, %v368
    %v372 = vlaneseq
    %v373 = vshrl.u32 %v372, 7
    %v374 = vsub.s32 3, %v373
    %v375 = vrot.slane %v303, %v374
    %v376 = vlaneseq
    %v377 = vshrl.u32 %v376, 7
    %v378 = vsub.s32 3, %v377
    %v379 = vrot.slane %v304, %v378
    %v380 = vlaneseq
    %v381 = vshrl.u32 %v380, 7
    %v382 = vsub.s32 3, %v381
    %v383 = vrot.slane %v305, %v382
    %384 = vset.pattern.permute.xlu0 19
    %385 = vperm.xlu0 %384, %v36
    %v386 = vpop.permute.xlu0 %385
    %v388 = vmul.f32 %v375, %v386
    %v389 = vmul.f32 %v379, %v386
    %v390 = vmul.f32 %v383, %v386
    %v391 = vadd.f32 %v369, %v388
    %v392 = vadd.f32 %v370, %v389
    %v393 = vadd.f32 %v371, %v390
    %397 = vrot.lane.b32.xlu0 %v391, 16
    %v398 = vpop.permute.xlu0 %397
    %399 = vrot.lane.b32.xlu0 %v392, 16
    %v400 = vpop.permute.xlu0 %399
    %401 = vrot.lane.b32.xlu0 %v393, 16
    %v402 = vpop.permute.xlu0 %401
    %vm403 = vcmask 130048
    %v404 = vsel %vm403, %v398, %v400
    %v405 = vsel %vm403, %v400, %v402
    %408 = vst [vmem:[#allocation7] sm:$0xff] %v404
    %409 = vst [vmem:[#allocation7 + $0x8] sm:$0xff] %v405
    %v410 = vlaneseq
    %v411 = vshrl.u32 %v410, 7
    %v412 = vsub.s32 4, %v411
    %v413 = vrot.slane %v303, %v412
    %v414 = vlaneseq
    %v415 = vshrl.u32 %v414, 7
    %v416 = vsub.s32 4, %v415
    %v417 = vrot.slane %v304, %v416
    %v418 = vlaneseq
    %v419 = vshrl.u32 %v418, 7
    %v420 = vsub.s32 4, %v419
    %v421 = vrot.slane %v305, %v420
    %v422 = vmul.f32 %v413, %v320
    %v423 = vmul.f32 %v417, %v320
    %v424 = vmul.f32 %v421, %v320
    %v425 = vadd.f32 %v422, 0.0
    %v426 = vadd.f32 %v423, 0.0
    %v427 = vadd.f32 %v424, 0.0
    %v428 = vlaneseq
    %v429 = vshrl.u32 %v428, 7
    %v430 = vsub.s32 5, %v429
    %v431 = vrot.slane %v303, %v430
    %v432 = vlaneseq
    %v433 = vshrl.u32 %v432, 7
    %v434 = vsub.s32 5, %v433
    %v435 = vrot.slane %v304, %v434
    %v436 = vlaneseq
    %v437 = vshrl.u32 %v436, 7
    %v438 = vsub.s32 5, %v437
    %v439 = vrot.slane %v305, %v438
    %v440 = vmul.f32 %v431, %v342
    %v441 = vmul.f32 %v435, %v342
    %v442 = vmul.f32 %v439, %v342
    %v443 = vadd.f32 %v425, %v440
    %v444 = vadd.f32 %v426, %v441
    %v445 = vadd.f32 %v427, %v442
    %v446 = vlaneseq
    %v447 = vshrl.u32 %v446, 7
    %v448 = vsub.s32 6, %v447
    %v449 = vrot.slane %v303, %v448
    %v450 = vlaneseq
    %v451 = vshrl.u32 %v450, 7
    %v452 = vsub.s32 6, %v451
    %v453 = vrot.slane %v304, %v452
    %v454 = vlaneseq
    %v455 = vshrl.u32 %v454, 7
    %v456 = vsub.s32 6, %v455
    %v457 = vrot.slane %v305, %v456
    %v458 = vmul.f32 %v449, %v364
    %v459 = vmul.f32 %v453, %v364
    %v460 = vmul.f32 %v457, %v364
    %v461 = vadd.f32 %v443, %v458
    %v462 = vadd.f32 %v444, %v459
    %v463 = vadd.f32 %v445, %v460
    %v464 = vlaneseq
    %v465 = vshrl.u32 %v464, 7
    %v466 = vsub.s32 7, %v465
    %v467 = vrot.slane %v303, %v466
    %v468 = vlaneseq
    %v469 = vshrl.u32 %v468, 7
    %v470 = vsub.s32 7, %v469
    %v471 = vrot.slane %v304, %v470
    %v472 = vlaneseq
    %v473 = vshrl.u32 %v472, 7
    %v474 = vsub.s32 7, %v473
    %v475 = vrot.slane %v305, %v474
    %v476 = vmul.f32 %v467, %v386
    %v477 = vmul.f32 %v471, %v386
    %v478 = vmul.f32 %v475, %v386
    %v479 = vadd.f32 %v461, %v476
    %v480 = vadd.f32 %v462, %v477
    %v481 = vadd.f32 %v463, %v478
    %485 = vrot.lane.b32.xlu0 %v479, 16
    %v486 = vpop.permute.xlu0 %485
    %487 = vrot.lane.b32.xlu0 %v480, 16
    %v488 = vpop.permute.xlu0 %487
    %489 = vrot.lane.b32.xlu0 %v481, 16
    %v490 = vpop.permute.xlu0 %489
    %v491 = vsel %vm403, %v486, %v488
    %v492 = vsel %vm403, %v488, %v490
    %s495 = scalar_lea.vmem [#allocation7], 16
    %496 = vst [vmem:[%s495] sm:$0xff] %v491
    %497 = vst [vmem:[%s495 + $0x8] sm:$0xff] %v492
    %v498 = vld [vmem:[#allocation7] sm:$0xff]
    %v499 = vld [vmem:[#allocation7 + $0x8] sm:$0xff]
    %v500 = vld [vmem:[#allocation7 + $0x10] sm:$0xff]
    %v501 = vld [vmem:[#allocation7 + $0x18] sm:$0xff]
    %v502 = vadd.f32 %v498, %v499
    %503 = vadd.xlane.f32.xlu0 %v502
    %v504 = vpop.xlane.xlu0 %503
    %v505 = vadd.f32 %v500, %v501
    %506 = vadd.xlane.f32.xlu0 %v505
    %v507 = vpop.xlane.xlu0 %506
    %v508 = vadd.f32 %v504, %v507
    %v509 = vmul.f32 %v498, %v498
    %v510 = vmul.f32 %v499, %v499
    %v511 = vmul.f32 %v500, %v500
    %v512 = vmul.f32 %v501, %v501
    %v513 = vadd.f32 %v509, %v510
    %514 = vadd.xlane.f32.xlu0 %v513
    %v515 = vpop.xlane.xlu0 %514
    %v516 = vadd.f32 %v511, %v512
    %517 = vadd.xlane.f32.xlu0 %v516
    %v518 = vpop.xlane.xlu0 %517
    %v519 = vadd.f32 %v515, %v518
    %v520 = vmul.f32 %v508, 0.001953125
    %v521 = vmul.f32 %v519, 0.001953125
    %v522 = vmul.f32 %v520, %v520
    %v523 = vsub.f32 %v521, %v522
    %v524 = vmax.f32 %v523, 0.0
    %v525 = vadd.f32 %v524, 1e-05
    %v526 = vrsqrt.pop %v525
    %v527 = vmul.f32 %v36, %v526
    %v528 = vmul.f32 %v520, %v527
    %530 = vrot.lane.b32.xlu0 %v528, 1
    %v531 = vpop.permute.xlu0 %530
    %v533 = vsub.f32 %v36, %v531
    %535 = vset.pattern.permute.xlu0 24
    %536 = vperm.xlu0 %535, %v527
    %v537 = vpop.permute.xlu0 %536
    %v539 = vmul.f32 %v498, %v537
    %v540 = vmul.f32 %v499, %v537
    %v541 = vmul.f32 %v500, %v537
    %v542 = vmul.f32 %v501, %v537
    %544 = vset.pattern.permute.xlu0 25
    %545 = vperm.xlu0 %544, %v533
    %v546 = vpop.permute.xlu0 %545
    %v548 = vadd.f32 %v539, %v546
    %v549 = vadd.f32 %v540, %v546
    %v550 = vadd.f32 %v541, %v546
    %v551 = vadd.f32 %v542, %v546
    %v552 = vmax.f32 %v548, 0.0
    %v553 = vmax.f32 %v549, 0.0
    %v554 = vmax.f32 %v550, 0.0
    %v555 = vmax.f32 %v551, 0.0
    %556 = vst [vmem:[#allocation7] sm:$0xff] %v552
    %557 = vst [vmem:[#allocation7 + $0x8] sm:$0xff] %v553
    %558 = vst [vmem:[#allocation7 + $0x10] sm:$0xff] %v554
    %559 = vst [vmem:[#allocation7 + $0x18] sm:$0xff] %v555
    // Predicated region
    $region14: #{tpu_custom_call.1} parent=1 // pred_check
      _
    $region15: #{tpu_custom_call.1} parent=1 // pred_check_branch
      %561 = sbr.rel (0) target = $region17
    $region16: #{tpu_custom_call.1} parent=1 // pred_region
      %s563 = ssub.s32 512, 512
      %564 = vsyncadd [#allocation6], %s563
      %s565 = sshll.u32 [#allocation7], 4
      %s566 = int_to_ptr.vmem [resolvable:$true] %s565
      %571 = dma.vmem_to_hbm [thread:$0]  %s566, 512, %s2, [#allocation6], 256, 256, 16
    $region17: #{tpu_custom_call.1} parent=1 // pred_fallthru
      _
    // Predicated region
    $region18: #{tpu_custom_call.1} parent=1 // pred_check
      _
    $region19: #{tpu_custom_call.1} parent=1 // pred_check_branch
      %573 = sbr.rel (0) target = $region21
    $region20: #{tpu_custom_call.1} parent=1 // pred_region
      %574 = dma.done [#allocation6], 512
    $region21: #{tpu_custom_call.1} parent=1 // pred_fallthru
      _
    %575 = vsyncpa [#allocation5], 1
    %576 = vsyncpa [#allocation6], 1
  %577 = vsyncmov [#allocation3]
  %s578 = vpop.sfrf %577
  %p579 = scmp.eq.s32.totalorder %s578, 0
  %p580 = pneg %p579
  %582 = shalt.err (%p580)

</llo_original>
